<compile_context>
chip_gen: v7x
topology: tpu7x:2x2x1
jax: 0.10.0
libtpu: 0.0.40
codegen_flags: <defaults>
</compile_context>

<pallas_src>
import functools
import math

import jax
import jax.numpy as jnp
from jax import lax
from jax.experimental import pallas as pl
from jax.experimental.pallas import tpu as pltpu


def _attn_subblock_kernel(x_ref, g_ref, b_ref, wqkv_ref, bqkv_ref, wo_ref, bo_ref,
                          o_ref, *, dim, num_heads, eps):
    head_dim = dim // num_heads
    bt, n, _ = x_ref.shape

    # ---- LayerNorm (eps=1e-6, elementwise affine), f32, two-pass variance ----
    x = x_ref[...].astype(jnp.float32)                        # (Bt, N, D)
    mean = jnp.mean(x, axis=-1, keepdims=True)
    xc = x - mean
    var = jnp.mean(xc * xc, axis=-1, keepdims=True)
    xn = xc * lax.rsqrt(var + eps)
    xn = (xn * g_ref[...] + b_ref[...]).astype(jnp.bfloat16)  # (Bt, N, D) bf16

    wqkv = wqkv_ref[...]   # (D, 3D) bf16, 1/sqrt(head_dim) folded into Q columns
    bqkv = bqkv_ref[...]   # (1, 3D) f32, scale folded into Q entries
    wo = wo_ref[...]       # (D, D)  bf16 (= out_proj_weight.T, head-major rows)
    bo = bo_ref[...]       # (1, D)  f32

    # bt is small (typically 1-2, see _pick_batch_block); heads are batched
    # inside, so this unroll stays tiny.
    for b in range(bt):
        # -- QKV projection: one 2-D bf16 matmul, f32 accumulation, ONE downcast --
        qkv = (jnp.dot(xn[b], wqkv, preferred_element_type=jnp.float32)
               + bqkv).astype(jnp.bfloat16)                   # (N, 3D) bf16

        # -- head-major (H, N, hd) stacks (only cheap slice/stack per head) --
        def heads(base):
            return jnp.stack(
                [qkv[:, base + h * head_dim: base + (h + 1) * head_dim]
                 for h in range(num_heads)],
                axis=0)                                       # (H, N, hd) bf16

        q = heads(0)
        k = heads(dim)
        v = heads(2 * dim)

        # -- attention, batched over heads, f32 accumulation on the MXU --
        s = jnp.einsum("hqd,hkd->hqk", q, k,
                       preferred_element_type=jnp.float32)    # (H, N, N)
        s = s - jnp.max(s, axis=-1, keepdims=True)
        p = jnp.exp(s)
        l = jnp.sum(p, axis=-1, keepdims=True)                # (H, N, 1)
        ctx = jnp.einsum("hqk,hkd->hqd", p.astype(jnp.bfloat16), v,
                         preferred_element_type=jnp.float32)  # (H, N, hd)
        # Normalize AFTER the PV matmul: an (H, N, hd) multiply instead of
        # (H, N, N).  approx reciprocal is fine for forward inference; swap for
        # an exact divide if this ever feeds training gradients.
        ctx = (ctx * pl.reciprocal(l, approx=True)).astype(jnp.bfloat16)

        # -- single K=D output projection on the head-major (N, D) context --
        ctx_flat = jnp.concatenate([ctx[h] for h in range(num_heads)], axis=-1)
        out = jnp.dot(ctx_flat, wo, preferred_element_type=jnp.float32) + bo
        o_ref[b] = out.astype(o_ref.dtype)


def _pick_batch_block(B, N, D, num_heads, budget_bytes=24 << 20):
    """Size the per-grid-step batch block from a VMEM budget, not just B."""
    hd = D // num_heads
    weight_bytes = 2 * 2 * (D * 3 * D + D * D)      # bf16 weights, double-buffered
    per_elem_io = 2 * 2 * (N * D * 4)               # x + out f32 blocks, double-buffered
    live_bytes = (N * 3 * D * 6                     # qkv f32 accum + bf16 copy
                  + num_heads * N * N * 4           # scores
                  + num_heads * N * hd * 4          # ctx f32
                  + N * D * 6)                      # ctx_flat bf16 + out f32
    avail = max(budget_bytes - weight_bytes - live_bytes, per_elem_io)
    cap = max(1, min(8, B, avail // per_elem_io))
    cap = min(cap, max(1, B // 4))                  # keep >= 4 grid steps when possible
    return max(d for d in range(1, cap + 1) if B % d == 0)


def attention_subblock(x, params, *, num_heads, batch_block=None):
    """x: (B, N, D) float32. params: LayerNorm + MHA parameters (PyTorch layout)."""
    B, N, D = x.shape
    assert D % num_heads == 0

    if batch_block is None:
        batch_block = _pick_batch_block(B, N, D, num_heads)
    assert B % batch_block == 0

    scale = 1.0 / math.sqrt(D // num_heads)
    gamma = params["ln_gamma"].reshape(1, D).astype(jnp.float32)
    beta = params["ln_beta"].reshape(1, D).astype(jnp.float32)

    # PyTorch stores in_proj_weight as (3D, D), used as x @ W.T.  Pre-transpose,
    # fold the attention scale into the Q projection, cast to bf16.
    # (Note: if params are traced jit args this prep re-runs per call as cheap
    #  XLA ops; pass them as closure constants to constant-fold it entirely.)
    col_scale = jnp.concatenate([jnp.full((D,), scale, jnp.float32),
                                 jnp.ones((2 * D,), jnp.float32)])
    wqkv_t = (params["in_proj_weight"].T.astype(jnp.float32)
              * col_scale[None, :]).astype(jnp.bfloat16)              # (D, 3D)
    bqkv = (params["in_proj_bias"].astype(jnp.float32) * col_scale
            ).reshape(1, 3 * D)
    wo_t = params["out_proj_weight"].T.astype(jnp.bfloat16)           # (D, D)
    bo = params["out_proj_bias"].reshape(1, D).astype(jnp.float32)

    kernel = functools.partial(
        _attn_subblock_kernel, dim=D, num_heads=num_heads, eps=1e-6)

    cost = pl.CostEstimate(
        flops=2 * B * N * (4 * D * D + 2 * N * D),
        transcendentals=B * num_heads * N * N,
        bytes_accessed=2 * B * N * D * 4 + (D * 3 * D + D * D) * 2 + 8 * D * 4)

    return pl.pallas_call(
        kernel,
        out_shape=jax.ShapeDtypeStruct((B, N, D), x.dtype),
        grid_spec=pltpu.PrefetchScalarGridSpec(
            num_scalar_prefetch=0,
            grid=(B // batch_block,),
            in_specs=[
                pl.BlockSpec((batch_block, N, D), lambda i: (i, 0, 0)),  # x
                pl.BlockSpec((1, D), lambda i: (0, 0)),                  # ln gamma
                pl.BlockSpec((1, D), lambda i: (0, 0)),                  # ln beta
                pl.BlockSpec((D, 3 * D), lambda i: (0, 0)),              # Wqkv^T (bf16, scale-folded)
                pl.BlockSpec((1, 3 * D), lambda i: (0, 0)),              # bqkv (scale-folded)
                pl.BlockSpec((D, D), lambda i: (0, 0)),                  # Wo^T (bf16)
                pl.BlockSpec((1, D), lambda i: (0, 0)),                  # bo
            ],
            out_specs=pl.BlockSpec((batch_block, N, D), lambda i: (i, 0, 0)),
        ),
        compiler_params=pltpu.CompilerParams(
            dimension_semantics=("parallel",),
            # 48 MiB: headroom on v7x (64 MiB physical per TC); conservative on
            # v5e/v6e (128 MiB physical).
            vmem_limit_bytes=48 * 1024 * 1024),
        cost_estimate=cost,
    )(x, gamma, beta, wqkv_t, bqkv, wo_t, bo)


def make_params(key, dim):
    """Deterministic synthetic parameters matching the PyTorch module's shapes."""
    k1, k2, k3 = jax.random.split(key, 3)
    return {
        "ln_gamma": jnp.ones((dim,), jnp.float32),
        "ln_beta": jnp.zeros((dim,), jnp.float32),
        "in_proj_weight": 0.05 * jax.random.normal(k1, (3 * dim, dim), jnp.float32),
        "in_proj_bias": 0.01 * jax.random.normal(k2, (3 * dim,), jnp.float32),
        "out_proj_weight": 0.05 * jax.random.normal(k3, (dim, dim), jnp.float32),
        "out_proj_bias": jnp.zeros((dim,), jnp.float32),
    }


def _reference(x, params, num_heads):
    """Pure-JAX f32 reference mirroring nn.LayerNorm + nn.MultiheadAttention."""
    B, N, D = x.shape
    hd = D // num_heads
    mean = jnp.mean(x, axis=-1, keepdims=True)
    var = jnp.mean((x - mean) ** 2, axis=-1, keepdims=True)
    xn = (x - mean) / jnp.sqrt(var + 1e-6)
    xn = xn * params["ln_gamma"] + params["ln_beta"]
    qkv = xn @ params["in_proj_weight"].T + params["in_proj_bias"]
    q, k, v = jnp.split(qkv, 3, axis=-1)

    def heads(t):  # (B, N, D) -> (B, H, N, hd)
        return t.reshape(B, N, num_heads, hd).transpose(0, 2, 1, 3)

    qh, kh, vh = heads(q), heads(k), heads(v)
    s = jnp.einsum("bhqd,bhkd->bhqk", qh * (1.0 / math.sqrt(hd)), kh)
    p = jax.nn.softmax(s, axis=-1)
    ctx = jnp.einsum("bhqk,bhkd->bhqd", p, vh).transpose(0, 2, 1, 3).reshape(B, N, D)
    return ctx @ params["out_proj_weight"].T + params["out_proj_bias"]


if __name__ == "__main__":
    B, N, D, H = 2, 8, 32, 4   # batch, seq, dim, num_heads (dim % num_heads == 0)
    key = jax.random.PRNGKey(0)
    kx, kp = jax.random.split(key)
    x = jax.random.normal(kx, (B, N, D), jnp.float32)
    params = make_params(kp, D)

    fn = jax.jit(functools.partial(attention_subblock, num_heads=H))
    out = jax.block_until_ready(fn(x, params))

    ref = _reference(x, params, H)
    assert out.shape == (B, N, D)
    max_diff = float(jnp.max(jnp.abs(out - ref)))
    # bf16 matmul operands + approx reciprocal loosen the tolerance vs. pure f32.
    assert jnp.allclose(out, ref, atol=2e-2, rtol=2e-2), f"max diff {max_diff}"
    print("KERNEL_OK")
</pallas_src>

<mosaic_0001>
module attributes {stable_mosaic.version = 11 : i64} {
  func.func @_attn_subblock_kernel(%arg0: i32, %arg1: memref<1x8x32xf32, #tpu.memory_space<vmem>>, %arg2: memref<1x32xf32, #tpu.memory_space<vmem>>, %arg3: memref<1x32xf32, #tpu.memory_space<vmem>>, %arg4: memref<32x96xbf16, #tpu.memory_space<vmem>>, %arg5: memref<1x96xf32, #tpu.memory_space<vmem>>, %arg6: memref<32x32xbf16, #tpu.memory_space<vmem>>, %arg7: memref<1x32xf32, #tpu.memory_space<vmem>>, %arg8: memref<1x8x32xf32, #tpu.memory_space<vmem>>) attributes {dimension_semantics = [#tpu.dimension_semantics<parallel>], iteration_bounds = array<i64: 2>, scalar_prefetch = 0 : i64, scratch_operands = 0 : i64, tpu.core_type = #tpu.core_type<tc>, window_params = [{transform_indices = @transform_0, window_bounds = array<i64: 1, 8, 32>}, {pipeline_mode = #tpu.pipeline_mode<synchronous>, transform_indices = @transform_1, window_bounds = array<i64: 1, 32>}, {pipeline_mode = #tpu.pipeline_mode<synchronous>, transform_indices = @transform_2, window_bounds = array<i64: 1, 32>}, {pipeline_mode = #tpu.pipeline_mode<synchronous>, transform_indices = @transform_3, window_bounds = array<i64: 32, 96>}, {pipeline_mode = #tpu.pipeline_mode<synchronous>, transform_indices = @transform_4, window_bounds = array<i64: 1, 96>}, {pipeline_mode = #tpu.pipeline_mode<synchronous>, transform_indices = @transform_5, window_bounds = array<i64: 32, 32>}, {pipeline_mode = #tpu.pipeline_mode<synchronous>, transform_indices = @transform_6, window_bounds = array<i64: 1, 32>}, {transform_indices = @transform_7, window_bounds = array<i64: 1, 8, 32>}]} {
    %c0 = arith.constant 0 : index
    %c0_0 = arith.constant 0 : index
    %c0_1 = arith.constant 0 : index
    %0 = vector.load %arg1[%c0, %c0_0, %c0_1] : memref<1x8x32xf32, #tpu.memory_space<vmem>>, vector<1x8x32xf32>
    %cst = arith.constant dense<0.000000e+00> : vector<1x8xf32>
    %1 = vector.multi_reduction <add>, %0, %cst [2] : vector<1x8x32xf32> to vector<1x8xf32>
    %2 = vector.shape_cast %1 : vector<1x8xf32> to vector<1x8x1xf32>
    %cst_2 = arith.constant 3.200000e+01 : f32
    %3 = vector.broadcast %cst_2 : f32 to vector<1x8x1xf32>
    %4 = arith.divf %2, %3 : vector<1x8x1xf32>
    %5 = vector.broadcast %4 : vector<1x8x1xf32> to vector<1x8x32xf32>
    %6 = arith.subf %0, %5 : vector<1x8x32xf32>
    %7 = arith.mulf %6, %6 : vector<1x8x32xf32>
    %cst_3 = arith.constant dense<0.000000e+00> : vector<1x8xf32>
    %8 = vector.multi_reduction <add>, %7, %cst_3 [2] : vector<1x8x32xf32> to vector<1x8xf32>
    %9 = vector.shape_cast %8 : vector<1x8xf32> to vector<1x8x1xf32>
    %cst_4 = arith.constant 3.200000e+01 : f32
    %10 = vector.broadcast %cst_4 : f32 to vector<1x8x1xf32>
    %11 = arith.divf %9, %10 : vector<1x8x1xf32>
    %cst_5 = arith.constant 9.99999997E-7 : f32
    %12 = vector.broadcast %cst_5 : f32 to vector<1x8x1xf32>
    %13 = arith.addf %11, %12 : vector<1x8x1xf32>
    %14 = math.rsqrt %13 : vector<1x8x1xf32>
    %15 = vector.broadcast %14 : vector<1x8x1xf32> to vector<1x8x32xf32>
    %16 = arith.mulf %6, %15 : vector<1x8x32xf32>
    %c0_6 = arith.constant 0 : index
    %c0_7 = arith.constant 0 : index
    %17 = vector.load %arg2[%c0_6, %c0_7] : memref<1x32xf32, #tpu.memory_space<vmem>>, vector<1x32xf32>
    %18 = vector.shape_cast %17 : vector<1x32xf32> to vector<1x1x32xf32>
    %19 = vector.broadcast %18 : vector<1x1x32xf32> to vector<1x8x32xf32>
    %20 = arith.mulf %16, %19 : vector<1x8x32xf32>
    %c0_8 = arith.constant 0 : index
    %c0_9 = arith.constant 0 : index
    %21 = vector.load %arg3[%c0_8, %c0_9] : memref<1x32xf32, #tpu.memory_space<vmem>>, vector<1x32xf32>
    %22 = vector.shape_cast %21 : vector<1x32xf32> to vector<1x1x32xf32>
    %23 = vector.broadcast %22 : vector<1x1x32xf32> to vector<1x8x32xf32>
    %24 = arith.addf %20, %23 : vector<1x8x32xf32>
    %25 = arith.truncf %24 : vector<1x8x32xf32> to vector<1x8x32xbf16>
    %c0_10 = arith.constant 0 : index
    %c0_11 = arith.constant 0 : index
    %26 = vector.load %arg4[%c0_10, %c0_11] : memref<32x96xbf16, #tpu.memory_space<vmem>>, vector<32x96xbf16>
    %c0_12 = arith.constant 0 : index
    %c0_13 = arith.constant 0 : index
    %27 = vector.load %arg5[%c0_12, %c0_13] : memref<1x96xf32, #tpu.memory_space<vmem>>, vector<1x96xf32>
    %c0_14 = arith.constant 0 : index
    %c0_15 = arith.constant 0 : index
    %28 = vector.load %arg6[%c0_14, %c0_15] : memref<32x32xbf16, #tpu.memory_space<vmem>>, vector<32x32xbf16>
    %c0_16 = arith.constant 0 : index
    %c0_17 = arith.constant 0 : index
    %29 = vector.load %arg7[%c0_16, %c0_17] : memref<1x32xf32, #tpu.memory_space<vmem>>, vector<1x32xf32>
    %30 = vector.shape_cast %25 : vector<1x8x32xbf16> to vector<8x32xbf16>
    %cst_18 = arith.constant dense<0.000000e+00> : vector<8x96xf32>
    %31 = tpu.matmul %30, %26, %cst_18 {dimension_numbers = #tpu.dot_dimension_numbers<[1], [0], [0], [1], [0, 0, 1, 1], [], []>} : vector<8x32xbf16>, vector<32x96xbf16>, vector<8x96xf32> -> vector<8x96xf32>
    %32 = vector.broadcast %27 : vector<1x96xf32> to vector<8x96xf32>
    %33 = arith.addf %31, %32 : vector<8x96xf32>
    %34 = arith.truncf %33 : vector<8x96xf32> to vector<8x96xbf16>
    %35 = vector.extract_strided_slice %34 {offsets = [0, 0], sizes = [8, 8], strides = [1, 1]} : vector<8x96xbf16> to vector<8x8xbf16>
    %36 = vector.extract_strided_slice %34 {offsets = [0, 8], sizes = [8, 8], strides = [1, 1]} : vector<8x96xbf16> to vector<8x8xbf16>
    %37 = vector.extract_strided_slice %34 {offsets = [0, 16], sizes = [8, 8], strides = [1, 1]} : vector<8x96xbf16> to vector<8x8xbf16>
    %38 = vector.extract_strided_slice %34 {offsets = [0, 24], sizes = [8, 8], strides = [1, 1]} : vector<8x96xbf16> to vector<8x8xbf16>
    %39 = vector.shape_cast %35 : vector<8x8xbf16> to vector<1x8x8xbf16>
    %40 = vector.shape_cast %36 : vector<8x8xbf16> to vector<1x8x8xbf16>
    %41 = vector.shape_cast %37 : vector<8x8xbf16> to vector<1x8x8xbf16>
    %42 = vector.shape_cast %38 : vector<8x8xbf16> to vector<1x8x8xbf16>
    %43 = tpu.concatenate %39, %40, %41, %42 in 0 : vector<1x8x8xbf16>, vector<1x8x8xbf16>, vector<1x8x8xbf16>, vector<1x8x8xbf16> -> vector<4x8x8xbf16>
    %44 = vector.extract_strided_slice %34 {offsets = [0, 32], sizes = [8, 8], strides = [1, 1]} : vector<8x96xbf16> to vector<8x8xbf16>
    %45 = vector.extract_strided_slice %34 {offsets = [0, 40], sizes = [8, 8], strides = [1, 1]} : vector<8x96xbf16> to vector<8x8xbf16>
    %46 = vector.extract_strided_slice %34 {offsets = [0, 48], sizes = [8, 8], strides = [1, 1]} : vector<8x96xbf16> to vector<8x8xbf16>
    %47 = vector.extract_strided_slice %34 {offsets = [0, 56], sizes = [8, 8], strides = [1, 1]} : vector<8x96xbf16> to vector<8x8xbf16>
    %48 = vector.shape_cast %44 : vector<8x8xbf16> to vector<1x8x8xbf16>
    %49 = vector.shape_cast %45 : vector<8x8xbf16> to vector<1x8x8xbf16>
    %50 = vector.shape_cast %46 : vector<8x8xbf16> to vector<1x8x8xbf16>
    %51 = vector.shape_cast %47 : vector<8x8xbf16> to vector<1x8x8xbf16>
    %52 = tpu.concatenate %48, %49, %50, %51 in 0 : vector<1x8x8xbf16>, vector<1x8x8xbf16>, vector<1x8x8xbf16>, vector<1x8x8xbf16> -> vector<4x8x8xbf16>
    %53 = vector.extract_strided_slice %34 {offsets = [0, 64], sizes = [8, 8], strides = [1, 1]} : vector<8x96xbf16> to vector<8x8xbf16>
    %54 = vector.extract_strided_slice %34 {offsets = [0, 72], sizes = [8, 8], strides = [1, 1]} : vector<8x96xbf16> to vector<8x8xbf16>
    %55 = vector.extract_strided_slice %34 {offsets = [0, 80], sizes = [8, 8], strides = [1, 1]} : vector<8x96xbf16> to vector<8x8xbf16>
    %56 = vector.extract_strided_slice %34 {offsets = [0, 88], sizes = [8, 8], strides = [1, 1]} : vector<8x96xbf16> to vector<8x8xbf16>
    %57 = vector.shape_cast %53 : vector<8x8xbf16> to vector<1x8x8xbf16>
    %58 = vector.shape_cast %54 : vector<8x8xbf16> to vector<1x8x8xbf16>
    %59 = vector.shape_cast %55 : vector<8x8xbf16> to vector<1x8x8xbf16>
    %60 = vector.shape_cast %56 : vector<8x8xbf16> to vector<1x8x8xbf16>
    %61 = tpu.concatenate %57, %58, %59, %60 in 0 : vector<1x8x8xbf16>, vector<1x8x8xbf16>, vector<1x8x8xbf16>, vector<1x8x8xbf16> -> vector<4x8x8xbf16>
    "tpu.trace_start"() <{level = 10 : i32, message = "hqd,hkd->hqk"}> : () -> ()
    %cst_19 = arith.constant dense<0.000000e+00> : vector<4x8x8xf32>
    %62 = tpu.matmul %43, %52, %cst_19 {dimension_numbers = #tpu.dot_dimension_numbers<[2], [2], [1], [1], [0, 0, 0, 1, 1, 1], [0], [0]>} : vector<4x8x8xbf16>, vector<4x8x8xbf16>, vector<4x8x8xf32> -> vector<4x8x8xf32>
    "tpu.trace_stop"() : () -> ()
    %cst_20 = arith.constant dense<0xFF800000> : vector<4x8xf32>
    %63 = vector.multi_reduction <maximumf>, %62, %cst_20 [2] : vector<4x8x8xf32> to vector<4x8xf32>
    %64 = vector.shape_cast %63 : vector<4x8xf32> to vector<4x8x1xf32>
    %65 = vector.broadcast %64 : vector<4x8x1xf32> to vector<4x8x8xf32>
    %66 = arith.subf %62, %65 : vector<4x8x8xf32>
    %67 = math.exp %66 : vector<4x8x8xf32>
    %cst_21 = arith.constant dense<0.000000e+00> : vector<4x8xf32>
    %68 = vector.multi_reduction <add>, %67, %cst_21 [2] : vector<4x8x8xf32> to vector<4x8xf32>
    %69 = vector.shape_cast %68 : vector<4x8xf32> to vector<4x8x1xf32>
    %70 = arith.truncf %67 : vector<4x8x8xf32> to vector<4x8x8xbf16>
    "tpu.trace_start"() <{level = 10 : i32, message = "hqk,hkd->hqd"}> : () -> ()
    %cst_22 = arith.constant dense<0.000000e+00> : vector<4x8x8xf32>
    %71 = tpu.matmul %70, %61, %cst_22 {dimension_numbers = #tpu.dot_dimension_numbers<[2], [1], [1], [2], [0, 0, 0, 1, 1, 2], [0], [0]>} : vector<4x8x8xbf16>, vector<4x8x8xbf16>, vector<4x8x8xf32> -> vector<4x8x8xf32>
    "tpu.trace_stop"() : () -> ()
    %72 = tpu.reciprocal %69 {approx = true} : vector<4x8x1xf32> -> vector<4x8x1xf32>
    %73 = vector.broadcast %72 : vector<4x8x1xf32> to vector<4x8x8xf32>
    %74 = arith.mulf %71, %73 : vector<4x8x8xf32>
    %75 = arith.truncf %74 : vector<4x8x8xf32> to vector<4x8x8xbf16>
    %76 = vector.extract_strided_slice %75 {offsets = [0, 0, 0], sizes = [1, 8, 8], strides = [1, 1, 1]} : vector<4x8x8xbf16> to vector<1x8x8xbf16>
    %77 = vector.shape_cast %76 : vector<1x8x8xbf16> to vector<8x8xbf16>
    %78 = vector.extract_strided_slice %75 {offsets = [1, 0, 0], sizes = [1, 8, 8], strides = [1, 1, 1]} : vector<4x8x8xbf16> to vector<1x8x8xbf16>
    %79 = vector.shape_cast %78 : vector<1x8x8xbf16> to vector<8x8xbf16>
    %80 = vector.extract_strided_slice %75 {offsets = [2, 0, 0], sizes = [1, 8, 8], strides = [1, 1, 1]} : vector<4x8x8xbf16> to vector<1x8x8xbf16>
    %81 = vector.shape_cast %80 : vector<1x8x8xbf16> to vector<8x8xbf16>
    %82 = vector.extract_strided_slice %75 {offsets = [3, 0, 0], sizes = [1, 8, 8], strides = [1, 1, 1]} : vector<4x8x8xbf16> to vector<1x8x8xbf16>
    %83 = vector.shape_cast %82 : vector<1x8x8xbf16> to vector<8x8xbf16>
    %84 = tpu.concatenate %77, %79, %81, %83 in 1 : vector<8x8xbf16>, vector<8x8xbf16>, vector<8x8xbf16>, vector<8x8xbf16> -> vector<8x32xbf16>
    %cst_23 = arith.constant dense<0.000000e+00> : vector<8x32xf32>
    %85 = tpu.matmul %84, %28, %cst_23 {dimension_numbers = #tpu.dot_dimension_numbers<[1], [0], [0], [1], [0, 0, 1, 1], [], []>} : vector<8x32xbf16>, vector<32x32xbf16>, vector<8x32xf32> -> vector<8x32xf32>
    %86 = vector.broadcast %29 : vector<1x32xf32> to vector<8x32xf32>
    %87 = arith.addf %85, %86 : vector<8x32xf32>
    %c0_24 = arith.constant 0 : index
    %c0_25 = arith.constant 0 : index
    %c0_26 = arith.constant 0 : index
    %88 = vector.load %arg8[%c0_24, %c0_25, %c0_26] : memref<1x8x32xf32, #tpu.memory_space<vmem>>, vector<1x8x32xf32>
    %89 = vector.shape_cast %88 : vector<1x8x32xf32> to vector<8x32xf32>
    %90 = vector.shape_cast %87 : vector<8x32xf32> to vector<1x8x32xf32>
    tpu.vector_store %arg8[%c0_24, %c0_25, %c0_26], %90 {strides = array<i32>} : memref<1x8x32xf32, #tpu.memory_space<vmem>>, vector<1x8x32xf32>,
    return
  }
  func.func @transform_0(%arg0: i32) -> (i32, i32, i32) {
    %c0_i32 = arith.constant 0 : i32
    %c0_i32_0 = arith.constant 0 : i32
    %c0_i32_1 = arith.constant 0 : i32
    return %arg0, %c0_i32, %c0_i32_0 : i32, i32, i32
  }
  func.func @transform_1(%arg0: i32) -> (i32, i32) {
    %c0_i32 = arith.constant 0 : i32
    %c0_i32_0 = arith.constant 0 : i32
    %c0_i32_1 = arith.constant 0 : i32
    return %c0_i32, %c0_i32_0 : i32, i32
  }
  func.func @transform_2(%arg0: i32) -> (i32, i32) {
    %c0_i32 = arith.constant 0 : i32
    %c0_i32_0 = arith.constant 0 : i32
    %c0_i32_1 = arith.constant 0 : i32
    return %c0_i32, %c0_i32_0 : i32, i32
  }
  func.func @transform_3(%arg0: i32) -> (i32, i32) {
    %c0_i32 = arith.constant 0 : i32
    %c0_i32_0 = arith.constant 0 : i32
    %c0_i32_1 = arith.constant 0 : i32
    return %c0_i32, %c0_i32_0 : i32, i32
  }
  func.func @transform_4(%arg0: i32) -> (i32, i32) {
    %c0_i32 = arith.constant 0 : i32
    %c0_i32_0 = arith.constant 0 : i32
    %c0_i32_1 = arith.constant 0 : i32
    return %c0_i32, %c0_i32_0 : i32, i32
  }
  func.func @transform_5(%arg0: i32) -> (i32, i32) {
    %c0_i32 = arith.constant 0 : i32
    %c0_i32_0 = arith.constant 0 : i32
    %c0_i32_1 = arith.constant 0 : i32
    return %c0_i32, %c0_i32_0 : i32, i32
  }
  func.func @transform_6(%arg0: i32) -> (i32, i32) {
    %c0_i32 = arith.constant 0 : i32
    %c0_i32_0 = arith.constant 0 : i32
    %c0_i32_1 = arith.constant 0 : i32
    return %c0_i32, %c0_i32_0 : i32, i32
  }
  func.func @transform_7(%arg0: i32) -> (i32, i32, i32) {
    %c0_i32 = arith.constant 0 : i32
    %c0_i32_0 = arith.constant 0 : i32
    %c0_i32_1 = arith.constant 0 : i32
    return %arg0, %c0_i32, %c0_i32_0 : i32, i32, i32
  }
}

</mosaic_0001>

<llo_original>
// kernel: attention_subblock.1
$region0: #{attention_subblock.1}
  #allocation0 [shape = 'u32[]', space=smem, size = 0x4, offset = 0x4, fixed_abs, tag = 'smem constant byte address 0x4 - core index']
  #allocation1 [shape = 'u32[144,128]{1,0:T(1,128)}', space=vmem, size = 0x12000, scoped, tag = 'internal scratch']
  %s0 = inlined_call_operand.vmem [shape: f32[2,8,32], index: 0, kind: input, shape index: {}]
  %s1 = inlined_call_operand.vmem [shape: f32[1,32], index: 1, kind: input, shape index: {}]
  %s2 = inlined_call_operand.vmem [shape: f32[1,32], index: 2, kind: input, shape index: {}]
  %s3 = inlined_call_operand.vmem [shape: bf16[32,96], index: 3, kind: input, shape index: {}]
  %s4 = inlined_call_operand.vmem [shape: f32[1,96], index: 4, kind: input, shape index: {}]
  %s5 = inlined_call_operand.vmem [shape: bf16[32,32], index: 5, kind: input, shape index: {}]
  %s6 = inlined_call_operand.vmem [shape: f32[1,32], index: 6, kind: input, shape index: {}]
  %s7 = inlined_call_operand.hbm [shape: f32[2,8,32], index: 7, kind: output, shape index: {}]
  %s8 = sld [smem:[#allocation0]]
  $region61: #{attention_subblock.1} parent=0
    _
  %s10 = ssub.s32 1, %s8
  %s11 = scalar_select 0, %s10, %s8
  $region1: #{attention_subblock.1} parent=0
    #allocation2 [shape = 'u8[8192]{0}', space=vmem, size = 0x2000, scoped, tag = 'output window, operand 0']
    #allocation3 [shape = 's32[2]{0}', space=sflag, size = 0x8, scoped, tag = 'scoped memory for attention_subblock.1']
    %12 = vsyncpa [#allocation3], 0
    %s13 = scalar_lea.sflag [#allocation3], 1
    %14 = vsyncpa %s13, 0
    loop: start=0, step=1, limit=4
    $region2: #{attention_subblock.1} parent=1 // loop_pre_header
      _
    $region3: #{attention_subblock.1} parent=1 // loop_header
      %s16 = sphi 0, %s20
      %p17 = scmp.ge.s32.totalorder %s16, 4
      %s26 = sphi 0, %s28
      %s29 = sphi 0, %s26
      %s30 = sphi 0, %s29
      %s46 = sphi 0, %s30
      %s50 = sphi 0, %s50
      %s52 = sphi 0, %s50
      %s53 = sphi 0, %s52
      %s67 = sphi 0, %s53
      %s71 = sphi 0, %s71
      %s73 = sphi 0, %s71
      %s74 = sphi 0, %s73
      %s88 = sphi 0, %s74
      %s92 = sphi 0, %s92
      %s94 = sphi 0, %s92
      %s95 = sphi 0, %s94
      %s109 = sphi 0, %s95
      %s113 = sphi 0, %s113
      %s115 = sphi 0, %s113
      %s116 = sphi 0, %s115
      %s130 = sphi 0, %s116
      %s134 = sphi 0, %s134
      %s136 = sphi 0, %s134
      %s137 = sphi 0, %s136
      %s151 = sphi 0, %s137
      %s155 = sphi 0, %s155
      %s157 = sphi 0, %s155
      %s158 = sphi 0, %s157
      %s172 = sphi 0, %s158
      %s178 = sphi 0, %s180
      %s181 = sphi 0, %s178
      %s182 = sphi 0, %s181
      %s198 = sphi 0, %s182
    $region4: #{attention_subblock.1} parent=1 // loop_header_branch
      %19 = sbr.rel (%p17) target = $region8
    $region5: #{attention_subblock.1} parent=1 // loop_body
      %s21 = ssub.s32 %s16, 1
      %s22 = ssub.s32 %s16, 2
      %s23 = sadd.s32 %s16, 1
      %s24 = ssub.s32 %s16, %s23
      %p25 = scmp.eq.s32.totalorder %s24, 0
      %s27 = sadd.s32 %s26, 1
      %s28 = scalar_select %p25, %s26, %s27
      %p31 = pneg %p25
      %p32 = scmp.eq.s32.totalorder %s16, 1
      %p33 = por %p31, %p32
      %p34 = scmp.ne.s32.totalorder %s26, %s29
      %p35 = scmp.eq.s32.totalorder %s16, 0
      %p36 = por %p34, %p35
      %p37 = scmp.ne.s32.totalorder %s26, %s29
      %p38 = scmp.eq.s32.totalorder %s21, 1
      %p39 = por %p37, %p38
      %p40 = scmp.ne.s32.totalorder %s29, %s30
      %p41 = scmp.eq.s32.totalorder %s21, 0
      %p42 = por %p40, %p41
      %p43 = scmp.ne.s32.totalorder %s29, %s30
      %p44 = scmp.eq.s32.totalorder %s22, 1
      %p45 = por %p43, %p44
      %p47 = scmp.ne.s32.totalorder %s30, %s46
      %p48 = scmp.eq.s32.totalorder %s22, 0
      %p49 = por %p47, %p48
      %s51 = sadd.s32 %s50, 1
      %p54 = scmp.eq.s32.totalorder %s16, 1
      %p55 = scmp.ne.s32.totalorder %s50, %s52
      %p56 = scmp.eq.s32.totalorder %s16, 0
      %p57 = por %p55, %p56
      %p58 = scmp.ne.s32.totalorder %s50, %s52
      %p59 = scmp.eq.s32.totalorder %s21, 1
      %p60 = por %p58, %p59
      %p61 = scmp.ne.s32.totalorder %s52, %s53
      %p62 = scmp.eq.s32.totalorder %s21, 0
      %p63 = por %p61, %p62
      %p64 = scmp.ne.s32.totalorder %s52, %s53
      %p65 = scmp.eq.s32.totalorder %s22, 1
      %p66 = por %p64, %p65
      %p68 = scmp.ne.s32.totalorder %s53, %s67
      %p69 = scmp.eq.s32.totalorder %s22, 0
      %p70 = por %p68, %p69
      %s72 = sadd.s32 %s71, 1
      %p75 = scmp.eq.s32.totalorder %s16, 1
      %p76 = scmp.ne.s32.totalorder %s71, %s73
      %p77 = scmp.eq.s32.totalorder %s16, 0
      %p78 = por %p76, %p77
      %p79 = scmp.ne.s32.totalorder %s71, %s73
      %p80 = scmp.eq.s32.totalorder %s21, 1
      %p81 = por %p79, %p80
      %p82 = scmp.ne.s32.totalorder %s73, %s74
      %p83 = scmp.eq.s32.totalorder %s21, 0
      %p84 = por %p82, %p83
      %p85 = scmp.ne.s32.totalorder %s73, %s74
      %p86 = scmp.eq.s32.totalorder %s22, 1
      %p87 = por %p85, %p86
      %p89 = scmp.ne.s32.totalorder %s74, %s88
      %p90 = scmp.eq.s32.totalorder %s22, 0
      %p91 = por %p89, %p90
      %s93 = sadd.s32 %s92, 1
      %p96 = scmp.eq.s32.totalorder %s16, 1
      %p97 = scmp.ne.s32.totalorder %s92, %s94
      %p98 = scmp.eq.s32.totalorder %s16, 0
      %p99 = por %p97, %p98
      %p100 = scmp.ne.s32.totalorder %s92, %s94
      %p101 = scmp.eq.s32.totalorder %s21, 1
      %p102 = por %p100, %p101
      %p103 = scmp.ne.s32.totalorder %s94, %s95
      %p104 = scmp.eq.s32.totalorder %s21, 0
      %p105 = por %p103, %p104
      %p106 = scmp.ne.s32.totalorder %s94, %s95
      %p107 = scmp.eq.s32.totalorder %s22, 1
      %p108 = por %p106, %p107
      %p110 = scmp.ne.s32.totalorder %s95, %s109
      %p111 = scmp.eq.s32.totalorder %s22, 0
      %p112 = por %p110, %p111
      %s114 = sadd.s32 %s113, 1
      %p117 = scmp.eq.s32.totalorder %s16, 1
      %p118 = scmp.ne.s32.totalorder %s113, %s115
      %p119 = scmp.eq.s32.totalorder %s16, 0
      %p120 = por %p118, %p119
      %p121 = scmp.ne.s32.totalorder %s113, %s115
      %p122 = scmp.eq.s32.totalorder %s21, 1
      %p123 = por %p121, %p122
      %p124 = scmp.ne.s32.totalorder %s115, %s116
      %p125 = scmp.eq.s32.totalorder %s21, 0
      %p126 = por %p124, %p125
      %p127 = scmp.ne.s32.totalorder %s115, %s116
      %p128 = scmp.eq.s32.totalorder %s22, 1
      %p129 = por %p127, %p128
      %p131 = scmp.ne.s32.totalorder %s116, %s130
      %p132 = scmp.eq.s32.totalorder %s22, 0
      %p133 = por %p131, %p132
      %s135 = sadd.s32 %s134, 1
      %p138 = scmp.eq.s32.totalorder %s16, 1
      %p139 = scmp.ne.s32.totalorder %s134, %s136
      %p140 = scmp.eq.s32.totalorder %s16, 0
      %p141 = por %p139, %p140
      %p142 = scmp.ne.s32.totalorder %s134, %s136
      %p143 = scmp.eq.s32.totalorder %s21, 1
      %p144 = por %p142, %p143
      %p145 = scmp.ne.s32.totalorder %s136, %s137
      %p146 = scmp.eq.s32.totalorder %s21, 0
      %p147 = por %p145, %p146
      %p148 = scmp.ne.s32.totalorder %s136, %s137
      %p149 = scmp.eq.s32.totalorder %s22, 1
      %p150 = por %p148, %p149
      %p152 = scmp.ne.s32.totalorder %s137, %s151
      %p153 = scmp.eq.s32.totalorder %s22, 0
      %p154 = por %p152, %p153
      %s156 = sadd.s32 %s155, 1
      %p159 = scmp.eq.s32.totalorder %s16, 1
      %p160 = scmp.ne.s32.totalorder %s155, %s157
      %p161 = scmp.eq.s32.totalorder %s16, 0
      %p162 = por %p160, %p161
      %p163 = scmp.ne.s32.totalorder %s155, %s157
      %p164 = scmp.eq.s32.totalorder %s21, 1
      %p165 = por %p163, %p164
      %p166 = scmp.ne.s32.totalorder %s157, %s158
      %p167 = scmp.eq.s32.totalorder %s21, 0
      %p168 = por %p166, %p167
      %p169 = scmp.ne.s32.totalorder %s157, %s158
      %p170 = scmp.eq.s32.totalorder %s22, 1
      %p171 = por %p169, %p170
      %p173 = scmp.ne.s32.totalorder %s158, %s172
      %p174 = scmp.eq.s32.totalorder %s22, 0
      %p175 = por %p173, %p174
      %s176 = ssub.s32 %s16, %s23
      %p177 = scmp.eq.s32.totalorder %s176, 0
      %s179 = sadd.s32 %s178, 1
      %s180 = scalar_select %p177, %s178, %s179
      %p183 = pneg %p177
      %p184 = scmp.eq.s32.totalorder %s16, 1
      %p185 = por %p183, %p184
      %p186 = scmp.ne.s32.totalorder %s178, %s181
      %p187 = scmp.eq.s32.totalorder %s16, 0
      %p188 = por %p186, %p187
      %p189 = scmp.ne.s32.totalorder %s178, %s181
      %p190 = scmp.eq.s32.totalorder %s21, 1
      %p191 = por %p189, %p190
      %p192 = scmp.ne.s32.totalorder %s181, %s182
      %p193 = scmp.eq.s32.totalorder %s21, 0
      %p194 = por %p192, %p193
      %p195 = scmp.ne.s32.totalorder %s181, %s182
      %p196 = scmp.eq.s32.totalorder %s22, 1
      %p197 = por %p195, %p196
      %p199 = scmp.ne.s32.totalorder %s182, %s198
      %p200 = scmp.eq.s32.totalorder %s22, 0
      %p201 = por %p199, %p200
      %p202 = scmp.le.s32.totalorder 1, %s16
      %p203 = scmp.lt.s32.totalorder %s16, 3
      %p204 = pnand %p202, %p203
      %p205 = pneg %p204
      // Predicated region
      $region9: #{attention_subblock.1} parent=5 // pred_check
        _
      $region10: #{attention_subblock.1} parent=5 // pred_check_branch
        %207 = sbr.rel (%p204) target = $region12
      $region11: #{attention_subblock.1} parent=5 // pred_region
        %s208 = ssub.s32 %s16, 1
        // Predicated region
        $region13: #{attention_subblock.1} parent=11 // pred_check
          %p209 = pneg %p63
        $region14: #{attention_subblock.1} parent=11 // pred_check_branch
          %211 = sbr.rel (%p209) target = $region16
        $region15: #{attention_subblock.1} parent=11 // pred_region
          _
        $region16: #{attention_subblock.1} parent=11 // pred_fallthru
          _
        // Predicated region
        $region17: #{attention_subblock.1} parent=11 // pred_check
          %p212 = pneg %p84
        $region18: #{attention_subblock.1} parent=11 // pred_check_branch
          %214 = sbr.rel (%p212) target = $region20
        $region19: #{attention_subblock.1} parent=11 // pred_region
          _
        $region20: #{attention_subblock.1} parent=11 // pred_fallthru
          _
        // Predicated region
        $region21: #{attention_subblock.1} parent=11 // pred_check
          %p215 = pneg %p105
        $region22: #{attention_subblock.1} parent=11 // pred_check_branch
          %217 = sbr.rel (%p215) target = $region24
        $region23: #{attention_subblock.1} parent=11 // pred_region
          _
        $region24: #{attention_subblock.1} parent=11 // pred_fallthru
          _
        // Predicated region
        $region25: #{attention_subblock.1} parent=11 // pred_check
          %p218 = pneg %p126
        $region26: #{attention_subblock.1} parent=11 // pred_check_branch
          %220 = sbr.rel (%p218) target = $region28
        $region27: #{attention_subblock.1} parent=11 // pred_region
          _
        $region28: #{attention_subblock.1} parent=11 // pred_fallthru
          _
        // Predicated region
        $region29: #{attention_subblock.1} parent=11 // pred_check
          %p221 = pneg %p147
        $region30: #{attention_subblock.1} parent=11 // pred_check_branch
          %223 = sbr.rel (%p221) target = $region32
        $region31: #{attention_subblock.1} parent=11 // pred_region
          _
        $region32: #{attention_subblock.1} parent=11 // pred_fallthru
          _
        // Predicated region
        $region33: #{attention_subblock.1} parent=11 // pred_check
          %p224 = pneg %p168
        $region34: #{attention_subblock.1} parent=11 // pred_check_branch
          %226 = sbr.rel (%p224) target = $region36
        $region35: #{attention_subblock.1} parent=11 // pred_region
          _
        $region36: #{attention_subblock.1} parent=11 // pred_fallthru
          _
      $region12: #{attention_subblock.1} parent=5 // pred_fallthru
        _
      %p227 = scmp.lt.s32.totalorder %s16, 2
      // Predicated region
      $region37: #{attention_subblock.1} parent=5 // pred_check
        %p228 = pneg %p227
      $region38: #{attention_subblock.1} parent=5 // pred_check_branch
        %230 = sbr.rel (%p228) target = $region40
      $region39: #{attention_subblock.1} parent=5 // pred_region
        // Predicated region
        $region41: #{attention_subblock.1} parent=39 // pred_check
          %p231 = pneg %p36
        $region42: #{attention_subblock.1} parent=39 // pred_check_branch
          %233 = sbr.rel (%p231) target = $region44
        $region43: #{attention_subblock.1} parent=39 // pred_region
          %p234 = scmp.lt.s32.totalorder %s16, 1
          %s235 = scalar_select %p234, %s16, 1
          %s236 = smul.addr %s235, 8
          %s237 = scalar_lea.vmem %s0, %s236
        $region44: #{attention_subblock.1} parent=39 // pred_fallthru
          _
      $region40: #{attention_subblock.1} parent=5 // pred_fallthru
        _
      %p238 = scmp.le.s32.totalorder 1, %s16
      %p239 = scmp.lt.s32.totalorder %s16, 3
      %p240 = pnand %p238, %p239
      %p241 = pneg %p240
      // Predicated region
      $region45: #{attention_subblock.1} parent=5 // pred_check
        _
      $region46: #{attention_subblock.1} parent=5 // pred_check_branch
        %243 = sbr.rel (%p240) target = $region48
      $region47: #{attention_subblock.1} parent=5 // pred_region
        %s244 = ssub.s32 %s16, 1
        %p245 = scmp.lt.s32.totalorder %s21, 1
        %s246 = scalar_select %p245, %s21, 1
        %s247 = smul.addr %s246, 8
        %s248 = scalar_lea.vmem %s0, %s247
        %p249 = pneg %p42
        %p250 = pneg %p39
        %p251 = pneg %p63
        %p252 = pneg %p60
        %p253 = pneg %p84
        %p254 = pneg %p81
        %p255 = pneg %p105
        %p256 = pneg %p102
        %p257 = pneg %p126
        %p258 = pneg %p123
        %p259 = pneg %p147
        %p260 = pneg %p144
        %p261 = pneg %p168
        %p262 = pneg %p165
        %p263 = pneg %p194
        %p264 = pneg %p191
        %s265 = sand.u32 %s181, 1
        %s266 = scalar_lea.sflag [#allocation3], %s265
        %s267 = sand.u32 %s181, 1
        %s268 = smul.addr %s267, 8
        %s269 = scalar_lea.vmem [#allocation2], %s268
        %p270 = scmp.lt.s32.totalorder %s21, 1
        %s271 = scalar_select %p270, %s21, 1
        %s272 = smul.addr %s271, 8
        %s273 = scalar_lea.vmem %s0, %s272
        %v275 = vld [vmem:[%s273] sm:$0xff]
        %vm276 = vcmask 261120
        %v277 = vsel %vm276, %v275, 0.0
        %278 = vadd.xlane.f32.xlu0 %v277
        %v279 = vpop.xlane.xlu0 %278
        %v280 = vrcp.pop 32.0
        %v281 = vmul.f32 %v279, %v280
        %v282 = vsub.f32 %v275, %v281
        %v283 = vmul.f32 %v282, %v282
        %v284 = vsel %vm276, %v283, 0.0
        %285 = vadd.xlane.f32.xlu0 %v284
        %v286 = vpop.xlane.xlu0 %285
        %v287 = vmul.f32 %v286, %v280
        %v288 = vadd.f32 %v287, 1e-06
        %v289 = vrsqrt.pop %v288
        %v290 = vmul.f32 %v282, %v289
        %v291 = vld [vmem:[%s1] sm:$0x1]
        %v293 = vlaneseq
        %v294 = vshrl.u32 %v293, 7
        %v295 = vsub.s32 0, %v294
        %v296 = vrot.slane %v291, %v295
        %v298 = vmul.f32 %v290, %v296
        %v299 = vld [vmem:[%s2] sm:$0x1]
        %v301 = vlaneseq
        %v302 = vshrl.u32 %v301, 7
        %v303 = vsub.s32 0, %v302
        %v304 = vrot.slane %v299, %v303
        %v306 = vadd.f32 %v298, %v304
        %v307 = vpack.c.bf16 %v306, %v306
        %v308 = vld [vmem:[%s3] sm:$0xf]
        %v309 = vld [vmem:[%s3 + $0x4] sm:$0xf]
        %v310 = vld [vmem:[%s3 + $0x8] sm:$0xf]
        %v311 = vld [vmem:[%s3 + $0xc] sm:$0xf]
        %v312 = vld [vmem:[%s4] sm:$0x1]
        %v313 = vld [vmem:[%s5] sm:$0xf]
        %v314 = vld [vmem:[%s5 + $0x4] sm:$0xf]
        %v315 = vld [vmem:[%s5 + $0x8] sm:$0xf]
        %v316 = vld [vmem:[%s5 + $0xc] sm:$0xf]
        %v317 = vld [vmem:[%s6] sm:$0x1]
        %v319 = vlaneseq
        %v320 = vshrl.u32 %v319, 7
        %v321 = vsub.s32 0, %v320
        %v322 = vrot.slane %v312, %v321
        %v328 = vunpack.c.l.b16 %v308
        %v329 = vunpack.c.l.b16 %v309
        %v330 = vunpack.c.l.b16 %v310
        %v331 = vunpack.c.l.b16 %v311
        %v332 = vpack.c.b16 %v329, %v328
        %v333 = vpack.c.b16 %v331, %v330
        %v337 = vsel %vm276, %v307, 0
        %339 = vmatprep.subr.bf16.mxu0 0
        %340 = vmatpush1.bf16.msra.mxu0 %v332
        %341 = vmatprep.subr.bf16.mxu0 0
        %342 = vmatpush1.bf16.msra.mxu0 %v333
        %343 = vmatprep.subr.bf16.mxu0 0
        %344 = vmatpush1.bf16.msra.mxu0 0
        %345 = vmatprep.subr.bf16.mxu0 0
        %346 = vmatpush1.bf16.msra.mxu0 0
        %347 = vmatprep.subr.bf16.mxu0 0
        %348 = vmatpush1.bf16.msra.mxu0 0
        %349 = vmatprep.subr.bf16.mxu0 0
        %350 = vmatpush1.bf16.msra.mxu0 0
        %351 = vmatprep.subr.bf16.mxu0 0
        %352 = vmatpush1.bf16.msra.mxu0 0
        %353 = vmatprep.subr.bf16.mxu0 0
        %354 = vmatpush1.bf16.msra.mxu0 0
        %355 = vmatprep.subr.bf16.mxu0 0
        %356 = vmatpush1.bf16.msra.mxu0 0
        %357 = vmatprep.subr.bf16.mxu0 0
        %358 = vmatpush1.bf16.msra.mxu0 0
        %359 = vmatprep.subr.bf16.mxu0 0
        %360 = vmatpush1.bf16.msra.mxu0 0
        %361 = vmatprep.subr.bf16.mxu0 0
        %362 = vmatpush1.bf16.msra.mxu0 0
        %363 = vmatprep.subr.bf16.mxu0 0
        %364 = vmatpush1.bf16.msra.mxu0 0
        %365 = vmatprep.subr.bf16.mxu0 0
        %366 = vmatpush1.bf16.msra.mxu0 0
        %367 = vmatprep.subr.bf16.mxu0 0
        %368 = vmatpush1.bf16.msra.mxu0 0
        %369 = vmatprep.subr.bf16.mxu0 0
        %370 = vmatpush1.bf16.msra.mxu0 0
        %371 = vmatprep.mubr.bf16.mxu0 0
        %372 = vmatmul.mubr.bf16.gmra.mrb[0].mxu0 %v337
        %v373 = vpop.f32.mrb[0].mxu0
        %v374 = vadd.f32 %v322, %v373
        %v375 = vpop.f32.mrb[0].mxu0
        %v376 = vpop.f32.mrb[0].mxu0
        %v377 = vpop.f32.mrb[0].mxu0
        %378 = vdwg.mxu0
        %v379 = vpack.c.bf16 %v374, %v374
        %381 = vrot.lane.b32.xlu0 %v379, 120
        %v382 = vpop.permute.xlu0 %381
        %383 = vrot.lane.b32.xlu0 %v379, 112
        %v384 = vpop.permute.xlu0 %383
        %385 = vrot.lane.b32.xlu0 %v379, 104
        %v386 = vpop.permute.xlu0 %385
        %387 = vrot.lane.b32.xlu0 %v379, 96
        %v388 = vpop.permute.xlu0 %387
        %vm389 = vcmask 64512
        %v391 = vsel %vm389, %v379, 0
        %v394 = vsel %vm389, %v388, 0
        %396 = vmatprep.subr.bf16.mxu0 0
        %397 = vmatpush1.bf16.xpose.msra.mxu0 %v394
        %398 = vmatprep.subr.bf16.mxu0 0
        %399 = vmatpush1.bf16.xpose.msra.mxu0 0
        %400 = vmatprep.subr.bf16.mxu0 0
        %401 = vmatpush1.bf16.xpose.msra.mxu0 0
        %402 = vmatprep.subr.bf16.mxu0 0
        %403 = vmatpush1.bf16.xpose.msra.mxu0 0
        %404 = vmatprep.subr.bf16.mxu0 0
        %405 = vmatpush1.bf16.xpose.msra.mxu0 0
        %406 = vmatprep.subr.bf16.mxu0 0
        %407 = vmatpush1.bf16.xpose.msra.mxu0 0
        %408 = vmatprep.subr.bf16.mxu0 0
        %409 = vmatpush1.bf16.xpose.msra.mxu0 0
        %410 = vmatprep.subr.bf16.mxu0 0
        %411 = vmatpush1.bf16.xpose.msra.mxu0 0
        %412 = vmatprep.subr.bf16.mxu0 0
        %413 = vmatpush1.bf16.xpose.msra.mxu0 0
        %414 = vmatprep.subr.bf16.mxu0 0
        %415 = vmatpush1.bf16.xpose.msra.mxu0 0
        %416 = vmatprep.subr.bf16.mxu0 0
        %417 = vmatpush1.bf16.xpose.msra.mxu0 0
        %418 = vmatprep.subr.bf16.mxu0 0
        %419 = vmatpush1.bf16.xpose.msra.mxu0 0
        %420 = vmatprep.subr.bf16.mxu0 0
        %421 = vmatpush1.bf16.xpose.msra.mxu0 0
        %422 = vmatprep.subr.bf16.mxu0 0
        %423 = vmatpush1.bf16.xpose.msra.mxu0 0
        %424 = vmatprep.subr.bf16.mxu0 0
        %425 = vmatpush1.bf16.xpose.msra.mxu0 0
        %426 = vmatprep.subr.bf16.mxu0 0
        %427 = vmatpush1.bf16.xpose.msra.mxu0 0
        %428 = vmatprep.mubr.bf16.mxu0 0
        %429 = vmatmul.mubr.bf16.gmra.mrb[0].mxu0 %v391
        %v430 = vpop.f32.mrb[0].mxu0
        %v431 = vadd.f32 0.0, %v430
        %v432 = vpop.f32.mrb[0].mxu0
        %v433 = vpop.f32.mrb[0].mxu0
        %v434 = vpop.f32.mrb[0].mxu0
        %435 = vdwg.mxu0
        %436 = vrot.lane.b32.xlu0 %v382, 96
        %v437 = vpop.permute.xlu0 %436
        %v439 = vsel %vm389, %v382, 0
        %v442 = vsel %vm389, %v437, 0
        %444 = vmatprep.subr.bf16.mxu0 0
        %445 = vmatpush1.bf16.xpose.msra.mxu0 %v442
        %446 = vmatprep.subr.bf16.mxu0 0
        %447 = vmatpush1.bf16.xpose.msra.mxu0 0
        %448 = vmatprep.subr.bf16.mxu0 0
        %449 = vmatpush1.bf16.xpose.msra.mxu0 0
        %450 = vmatprep.subr.bf16.mxu0 0
        %451 = vmatpush1.bf16.xpose.msra.mxu0 0
        %452 = vmatprep.subr.bf16.mxu0 0
        %453 = vmatpush1.bf16.xpose.msra.mxu0 0
        %454 = vmatprep.subr.bf16.mxu0 0
        %455 = vmatpush1.bf16.xpose.msra.mxu0 0
        %456 = vmatprep.subr.bf16.mxu0 0
        %457 = vmatpush1.bf16.xpose.msra.mxu0 0
        %458 = vmatprep.subr.bf16.mxu0 0
        %459 = vmatpush1.bf16.xpose.msra.mxu0 0
        %460 = vmatprep.subr.bf16.mxu0 0
        %461 = vmatpush1.bf16.xpose.msra.mxu0 0
        %462 = vmatprep.subr.bf16.mxu0 0
        %463 = vmatpush1.bf16.xpose.msra.mxu0 0
        %464 = vmatprep.subr.bf16.mxu0 0
        %465 = vmatpush1.bf16.xpose.msra.mxu0 0
        %466 = vmatprep.subr.bf16.mxu0 0
        %467 = vmatpush1.bf16.xpose.msra.mxu0 0
        %468 = vmatprep.subr.bf16.mxu0 0
        %469 = vmatpush1.bf16.xpose.msra.mxu0 0
        %470 = vmatprep.subr.bf16.mxu0 0
        %471 = vmatpush1.bf16.xpose.msra.mxu0 0
        %472 = vmatprep.subr.bf16.mxu0 0
        %473 = vmatpush1.bf16.xpose.msra.mxu0 0
        %474 = vmatprep.subr.bf16.mxu0 0
        %475 = vmatpush1.bf16.xpose.msra.mxu0 0
        %476 = vmatprep.mubr.bf16.mxu0 0
        %477 = vmatmul.mubr.bf16.gmra.mrb[0].mxu0 %v439
        %v478 = vpop.f32.mrb[0].mxu0
        %v479 = vadd.f32 0.0, %v478
        %v480 = vpop.f32.mrb[0].mxu0
        %v481 = vpop.f32.mrb[0].mxu0
        %v482 = vpop.f32.mrb[0].mxu0
        %483 = vdwg.mxu0
        %484 = vrot.lane.b32.xlu0 %v384, 96
        %v485 = vpop.permute.xlu0 %484
        %v487 = vsel %vm389, %v384, 0
        %v490 = vsel %vm389, %v485, 0
        %492 = vmatprep.subr.bf16.mxu0 0
        %493 = vmatpush1.bf16.xpose.msra.mxu0 %v490
        %494 = vmatprep.subr.bf16.mxu0 0
        %495 = vmatpush1.bf16.xpose.msra.mxu0 0
        %496 = vmatprep.subr.bf16.mxu0 0
        %497 = vmatpush1.bf16.xpose.msra.mxu0 0
        %498 = vmatprep.subr.bf16.mxu0 0
        %499 = vmatpush1.bf16.xpose.msra.mxu0 0
        %500 = vmatprep.subr.bf16.mxu0 0
        %501 = vmatpush1.bf16.xpose.msra.mxu0 0
        %502 = vmatprep.subr.bf16.mxu0 0
        %503 = vmatpush1.bf16.xpose.msra.mxu0 0
        %504 = vmatprep.subr.bf16.mxu0 0
        %505 = vmatpush1.bf16.xpose.msra.mxu0 0
        %506 = vmatprep.subr.bf16.mxu0 0
        %507 = vmatpush1.bf16.xpose.msra.mxu0 0
        %508 = vmatprep.subr.bf16.mxu0 0
        %509 = vmatpush1.bf16.xpose.msra.mxu0 0
        %510 = vmatprep.subr.bf16.mxu0 0
        %511 = vmatpush1.bf16.xpose.msra.mxu0 0
        %512 = vmatprep.subr.bf16.mxu0 0
        %513 = vmatpush1.bf16.xpose.msra.mxu0 0
        %514 = vmatprep.subr.bf16.mxu0 0
        %515 = vmatpush1.bf16.xpose.msra.mxu0 0
        %516 = vmatprep.subr.bf16.mxu0 0
        %517 = vmatpush1.bf16.xpose.msra.mxu0 0
        %518 = vmatprep.subr.bf16.mxu0 0
        %519 = vmatpush1.bf16.xpose.msra.mxu0 0
        %520 = vmatprep.subr.bf16.mxu0 0
        %521 = vmatpush1.bf16.xpose.msra.mxu0 0
        %522 = vmatprep.subr.bf16.mxu0 0
        %523 = vmatpush1.bf16.xpose.msra.mxu0 0
        %524 = vmatprep.mubr.bf16.mxu0 0
        %525 = vmatmul.mubr.bf16.gmra.mrb[0].mxu0 %v487
        %v526 = vpop.f32.mrb[0].mxu0
        %v527 = vadd.f32 0.0, %v526
        %v528 = vpop.f32.mrb[0].mxu0
        %v529 = vpop.f32.mrb[0].mxu0
        %v530 = vpop.f32.mrb[0].mxu0
        %531 = vdwg.mxu0
        %532 = vrot.lane.b32.xlu0 %v386, 96
        %v533 = vpop.permute.xlu0 %532
        %v535 = vsel %vm389, %v386, 0
        %v538 = vsel %vm389, %v533, 0
        %540 = vmatprep.subr.bf16.mxu0 0
        %541 = vmatpush1.bf16.xpose.msra.mxu0 %v538
        %542 = vmatprep.subr.bf16.mxu0 0
        %543 = vmatpush1.bf16.xpose.msra.mxu0 0
        %544 = vmatprep.subr.bf16.mxu0 0
        %545 = vmatpush1.bf16.xpose.msra.mxu0 0
        %546 = vmatprep.subr.bf16.mxu0 0
        %547 = vmatpush1.bf16.xpose.msra.mxu0 0
        %548 = vmatprep.subr.bf16.mxu0 0
        %549 = vmatpush1.bf16.xpose.msra.mxu0 0
        %550 = vmatprep.subr.bf16.mxu0 0
        %551 = vmatpush1.bf16.xpose.msra.mxu0 0
        %552 = vmatprep.subr.bf16.mxu0 0
        %553 = vmatpush1.bf16.xpose.msra.mxu0 0
        %554 = vmatprep.subr.bf16.mxu0 0
        %555 = vmatpush1.bf16.xpose.msra.mxu0 0
        %556 = vmatprep.subr.bf16.mxu0 0
        %557 = vmatpush1.bf16.xpose.msra.mxu0 0
        %558 = vmatprep.subr.bf16.mxu0 0
        %559 = vmatpush1.bf16.xpose.msra.mxu0 0
        %560 = vmatprep.subr.bf16.mxu0 0
        %561 = vmatpush1.bf16.xpose.msra.mxu0 0
        %562 = vmatprep.subr.bf16.mxu0 0
        %563 = vmatpush1.bf16.xpose.msra.mxu0 0
        %564 = vmatprep.subr.bf16.mxu0 0
        %565 = vmatpush1.bf16.xpose.msra.mxu0 0
        %566 = vmatprep.subr.bf16.mxu0 0
        %567 = vmatpush1.bf16.xpose.msra.mxu0 0
        %568 = vmatprep.subr.bf16.mxu0 0
        %569 = vmatpush1.bf16.xpose.msra.mxu0 0
        %570 = vmatprep.subr.bf16.mxu0 0
        %571 = vmatpush1.bf16.xpose.msra.mxu0 0
        %572 = vmatprep.mubr.bf16.mxu0 0
        %573 = vmatmul.mubr.bf16.gmra.mrb[0].mxu0 %v535
        %v574 = vpop.f32.mrb[0].mxu0
        %v575 = vadd.f32 0.0, %v574
        %v576 = vpop.f32.mrb[0].mxu0
        %v577 = vpop.f32.mrb[0].mxu0
        %v578 = vpop.f32.mrb[0].mxu0
        %579 = vdwg.mxu0
        %v580 = vsel %vm389, %v431, -inf
        %581 = vmax.xlane.f32.xlu0 %v580
        %v582 = vpop.xlane.xlu0 %581
        %v583 = vsel %vm389, %v479, -inf
        %584 = vmax.xlane.f32.xlu0 %v583
        %v585 = vpop.xlane.xlu0 %584
        %v586 = vsel %vm389, %v527, -inf
        %587 = vmax.xlane.f32.xlu0 %v586
        %v588 = vpop.xlane.xlu0 %587
        %v589 = vsel %vm389, %v575, -inf
        %590 = vmax.xlane.f32.xlu0 %v589
        %v591 = vpop.xlane.xlu0 %590
        %v592 = vsub.f32 %v431, %v582
        %v593 = vsub.f32 %v479, %v585
        %v594 = vsub.f32 %v527, %v588
        %v595 = vsub.f32 %v575, %v591
        %v596 = vmul.f32 %v592, 1.442695
        %v597 = vpow.pop %v596
        %v598 = vmul.f32 %v593, 1.442695
        %v599 = vpow.pop %v598
        %v600 = vmul.f32 %v594, 1.442695
        %v601 = vpow.pop %v600
        %v602 = vmul.f32 %v595, 1.442695
        %v603 = vpow.pop %v602
        %v604 = vsel %vm389, %v597, 0.0
        %605 = vadd.xlane.f32.xlu0 %v604
        %v606 = vpop.xlane.xlu0 %605
        %v607 = vsel %vm389, %v599, 0.0
        %608 = vadd.xlane.f32.xlu0 %v607
        %v609 = vpop.xlane.xlu0 %608
        %v610 = vsel %vm389, %v601, 0.0
        %611 = vadd.xlane.f32.xlu0 %v610
        %v612 = vpop.xlane.xlu0 %611
        %v613 = vsel %vm389, %v603, 0.0
        %614 = vadd.xlane.f32.xlu0 %v613
        %v615 = vpop.xlane.xlu0 %614
        %v616 = vpack.c.bf16 %v597, %v597
        %v617 = vpack.c.bf16 %v599, %v599
        %v618 = vpack.c.bf16 %v601, %v601
        %v619 = vpack.c.bf16 %v603, %v603
        %620 = vrot.lane.b32.xlu0 %v379, 64
        %v621 = vpop.permute.xlu0 %620
        %v623 = vsel %vm389, %v616, 0
        %vm625 = vcmask 1043456
        %v627 = vsel %vm625, %v621, 0
        %629 = vmatprep.subr.bf16.mxu0 0
        %630 = vmatpush1.bf16.msra.mxu0 %v627
        %631 = vmatprep.subr.bf16.mxu0 0
        %632 = vmatpush1.bf16.msra.mxu0 0
        %633 = vmatprep.subr.bf16.mxu0 0
        %634 = vmatpush1.bf16.msra.mxu0 0
        %635 = vmatprep.subr.bf16.mxu0 0
        %636 = vmatpush1.bf16.msra.mxu0 0
        %637 = vmatprep.subr.bf16.mxu0 0
        %638 = vmatpush1.bf16.msra.mxu0 0
        %639 = vmatprep.subr.bf16.mxu0 0
        %640 = vmatpush1.bf16.msra.mxu0 0
        %641 = vmatprep.subr.bf16.mxu0 0
        %642 = vmatpush1.bf16.msra.mxu0 0
        %643 = vmatprep.subr.bf16.mxu0 0
        %644 = vmatpush1.bf16.msra.mxu0 0
        %645 = vmatprep.subr.bf16.mxu0 0
        %646 = vmatpush1.bf16.msra.mxu0 0
        %647 = vmatprep.subr.bf16.mxu0 0
        %648 = vmatpush1.bf16.msra.mxu0 0
        %649 = vmatprep.subr.bf16.mxu0 0
        %650 = vmatpush1.bf16.msra.mxu0 0
        %651 = vmatprep.subr.bf16.mxu0 0
        %652 = vmatpush1.bf16.msra.mxu0 0
        %653 = vmatprep.subr.bf16.mxu0 0
        %654 = vmatpush1.bf16.msra.mxu0 0
        %655 = vmatprep.subr.bf16.mxu0 0
        %656 = vmatpush1.bf16.msra.mxu0 0
        %657 = vmatprep.subr.bf16.mxu0 0
        %658 = vmatpush1.bf16.msra.mxu0 0
        %659 = vmatprep.subr.bf16.mxu0 0
        %660 = vmatpush1.bf16.msra.mxu0 0
        %661 = vmatprep.mubr.bf16.mxu0 0
        %662 = vmatmul.mubr.bf16.gmra.mrb[0].mxu0 %v623
        %v663 = vpop.f32.mrb[0].mxu0
        %v664 = vadd.f32 0.0, %v663
        %v665 = vpop.f32.mrb[0].mxu0
        %v666 = vpop.f32.mrb[0].mxu0
        %v667 = vpop.f32.mrb[0].mxu0
        %668 = vdwg.mxu0
        %669 = vrot.lane.b32.xlu0 %v382, 64
        %v670 = vpop.permute.xlu0 %669
        %v672 = vsel %vm389, %v617, 0
        %v675 = vsel %vm625, %v670, 0
        %677 = vmatprep.subr.bf16.mxu0 0
        %678 = vmatpush1.bf16.msra.mxu0 %v675
        %679 = vmatprep.subr.bf16.mxu0 0
        %680 = vmatpush1.bf16.msra.mxu0 0
        %681 = vmatprep.subr.bf16.mxu0 0
        %682 = vmatpush1.bf16.msra.mxu0 0
        %683 = vmatprep.subr.bf16.mxu0 0
        %684 = vmatpush1.bf16.msra.mxu0 0
        %685 = vmatprep.subr.bf16.mxu0 0
        %686 = vmatpush1.bf16.msra.mxu0 0
        %687 = vmatprep.subr.bf16.mxu0 0
        %688 = vmatpush1.bf16.msra.mxu0 0
        %689 = vmatprep.subr.bf16.mxu0 0
        %690 = vmatpush1.bf16.msra.mxu0 0
        %691 = vmatprep.subr.bf16.mxu0 0
        %692 = vmatpush1.bf16.msra.mxu0 0
        %693 = vmatprep.subr.bf16.mxu0 0
        %694 = vmatpush1.bf16.msra.mxu0 0
        %695 = vmatprep.subr.bf16.mxu0 0
        %696 = vmatpush1.bf16.msra.mxu0 0
        %697 = vmatprep.subr.bf16.mxu0 0
        %698 = vmatpush1.bf16.msra.mxu0 0
        %699 = vmatprep.subr.bf16.mxu0 0
        %700 = vmatpush1.bf16.msra.mxu0 0
        %701 = vmatprep.subr.bf16.mxu0 0
        %702 = vmatpush1.bf16.msra.mxu0 0
        %703 = vmatprep.subr.bf16.mxu0 0
        %704 = vmatpush1.bf16.msra.mxu0 0
        %705 = vmatprep.subr.bf16.mxu0 0
        %706 = vmatpush1.bf16.msra.mxu0 0
        %707 = vmatprep.subr.bf16.mxu0 0
        %708 = vmatpush1.bf16.msra.mxu0 0
        %709 = vmatprep.mubr.bf16.mxu0 0
        %710 = vmatmul.mubr.bf16.gmra.mrb[0].mxu0 %v672
        %v711 = vpop.f32.mrb[0].mxu0
        %v712 = vadd.f32 0.0, %v711
        %v713 = vpop.f32.mrb[0].mxu0
        %v714 = vpop.f32.mrb[0].mxu0
        %v715 = vpop.f32.mrb[0].mxu0
        %716 = vdwg.mxu0
        %717 = vrot.lane.b32.xlu0 %v384, 64
        %v718 = vpop.permute.xlu0 %717
        %v720 = vsel %vm389, %v618, 0
        %v723 = vsel %vm625, %v718, 0
        %725 = vmatprep.subr.bf16.mxu0 0
        %726 = vmatpush1.bf16.msra.mxu0 %v723
        %727 = vmatprep.subr.bf16.mxu0 0
        %728 = vmatpush1.bf16.msra.mxu0 0
        %729 = vmatprep.subr.bf16.mxu0 0
        %730 = vmatpush1.bf16.msra.mxu0 0
        %731 = vmatprep.subr.bf16.mxu0 0
        %732 = vmatpush1.bf16.msra.mxu0 0
        %733 = vmatprep.subr.bf16.mxu0 0
        %734 = vmatpush1.bf16.msra.mxu0 0
        %735 = vmatprep.subr.bf16.mxu0 0
        %736 = vmatpush1.bf16.msra.mxu0 0
        %737 = vmatprep.subr.bf16.mxu0 0
        %738 = vmatpush1.bf16.msra.mxu0 0
        %739 = vmatprep.subr.bf16.mxu0 0
        %740 = vmatpush1.bf16.msra.mxu0 0
        %741 = vmatprep.subr.bf16.mxu0 0
        %742 = vmatpush1.bf16.msra.mxu0 0
        %743 = vmatprep.subr.bf16.mxu0 0
        %744 = vmatpush1.bf16.msra.mxu0 0
        %745 = vmatprep.subr.bf16.mxu0 0
        %746 = vmatpush1.bf16.msra.mxu0 0
        %747 = vmatprep.subr.bf16.mxu0 0
        %748 = vmatpush1.bf16.msra.mxu0 0
        %749 = vmatprep.subr.bf16.mxu0 0
        %750 = vmatpush1.bf16.msra.mxu0 0
        %751 = vmatprep.subr.bf16.mxu0 0
        %752 = vmatpush1.bf16.msra.mxu0 0
        %753 = vmatprep.subr.bf16.mxu0 0
        %754 = vmatpush1.bf16.msra.mxu0 0
        %755 = vmatprep.subr.bf16.mxu0 0
        %756 = vmatpush1.bf16.msra.mxu0 0
        %757 = vmatprep.mubr.bf16.mxu0 0
        %758 = vmatmul.mubr.bf16.gmra.mrb[0].mxu0 %v720
        %v759 = vpop.f32.mrb[0].mxu0
        %v760 = vadd.f32 0.0, %v759
        %v761 = vpop.f32.mrb[0].mxu0
        %v762 = vpop.f32.mrb[0].mxu0
        %v763 = vpop.f32.mrb[0].mxu0
        %764 = vdwg.mxu0
        %765 = vrot.lane.b32.xlu0 %v386, 64
        %v766 = vpop.permute.xlu0 %765
        %v768 = vsel %vm389, %v619, 0
        %v771 = vsel %vm625, %v766, 0
        %773 = vmatprep.subr.bf16.mxu0 0
        %774 = vmatpush1.bf16.msra.mxu0 %v771
        %775 = vmatprep.subr.bf16.mxu0 0
        %776 = vmatpush1.bf16.msra.mxu0 0
        %777 = vmatprep.subr.bf16.mxu0 0
        %778 = vmatpush1.bf16.msra.mxu0 0
        %779 = vmatprep.subr.bf16.mxu0 0
        %780 = vmatpush1.bf16.msra.mxu0 0
        %781 = vmatprep.subr.bf16.mxu0 0
        %782 = vmatpush1.bf16.msra.mxu0 0
        %783 = vmatprep.subr.bf16.mxu0 0
        %784 = vmatpush1.bf16.msra.mxu0 0
        %785 = vmatprep.subr.bf16.mxu0 0
        %786 = vmatpush1.bf16.msra.mxu0 0
        %787 = vmatprep.subr.bf16.mxu0 0
        %788 = vmatpush1.bf16.msra.mxu0 0
        %789 = vmatprep.subr.bf16.mxu0 0
        %790 = vmatpush1.bf16.msra.mxu0 0
        %791 = vmatprep.subr.bf16.mxu0 0
        %792 = vmatpush1.bf16.msra.mxu0 0
        %793 = vmatprep.subr.bf16.mxu0 0
        %794 = vmatpush1.bf16.msra.mxu0 0
        %795 = vmatprep.subr.bf16.mxu0 0
        %796 = vmatpush1.bf16.msra.mxu0 0
        %797 = vmatprep.subr.bf16.mxu0 0
        %798 = vmatpush1.bf16.msra.mxu0 0
        %799 = vmatprep.subr.bf16.mxu0 0
        %800 = vmatpush1.bf16.msra.mxu0 0
        %801 = vmatprep.subr.bf16.mxu0 0
        %802 = vmatpush1.bf16.msra.mxu0 0
        %803 = vmatprep.subr.bf16.mxu0 0
        %804 = vmatpush1.bf16.msra.mxu0 0
        %805 = vmatprep.mubr.bf16.mxu0 0
        %806 = vmatmul.mubr.bf16.gmra.mrb[0].mxu0 %v768
        %v807 = vpop.f32.mrb[0].mxu0
        %v808 = vadd.f32 0.0, %v807
        %v809 = vpop.f32.mrb[0].mxu0
        %v810 = vpop.f32.mrb[0].mxu0
        %v811 = vpop.f32.mrb[0].mxu0
        %812 = vdwg.mxu0
        %v813 = vrcp.pop %v606
        %v814 = vrcp.pop %v609
        %v815 = vrcp.pop %v612
        %v816 = vrcp.pop %v615
        %v817 = vmul.f32 %v664, %v813
        %v818 = vmul.f32 %v712, %v814
        %v819 = vmul.f32 %v760, %v815
        %v820 = vmul.f32 %v808, %v816
        %v821 = vpack.c.bf16 %v817, %v817
        %v822 = vpack.c.bf16 %v818, %v818
        %v823 = vpack.c.bf16 %v819, %v819
        %v824 = vpack.c.bf16 %v820, %v820
        %826 = vrot.lane.b32.xlu0 %v822, 8
        %v827 = vpop.permute.xlu0 %826
        %829 = vrot.lane.b32.xlu0 %v823, 16
        %v830 = vpop.permute.xlu0 %829
        %832 = vrot.lane.b32.xlu0 %v824, 24
        %v833 = vpop.permute.xlu0 %832
        %v836 = vsel %vm389, %v821, %v827
        %vm837 = vcmask 130048
        %v839 = vsel %vm837, %v836, %v830
        %vm840 = vcmask 195584
        %v842 = vsel %vm840, %v839, %v833
        %v844 = vlaneseq
        %v845 = vshrl.u32 %v844, 7
        %v846 = vsub.s32 0, %v845
        %v847 = vrot.slane %v317, %v846
        %v853 = vunpack.c.l.b16 %v313
        %v854 = vunpack.c.l.b16 %v314
        %v855 = vunpack.c.l.b16 %v315
        %v856 = vunpack.c.l.b16 %v316
        %v857 = vpack.c.b16 %v854, %v853
        %v858 = vpack.c.b16 %v856, %v855
        %v861 = vsel %vm276, %v842, 0
        %863 = vmatprep.subr.bf16.mxu0 0
        %864 = vmatpush1.bf16.msra.mxu0 %v857
        %865 = vmatprep.subr.bf16.mxu0 0
        %866 = vmatpush1.bf16.msra.mxu0 %v858
        %867 = vmatprep.subr.bf16.mxu0 0
        %868 = vmatpush1.bf16.msra.mxu0 0
        %869 = vmatprep.subr.bf16.mxu0 0
        %870 = vmatpush1.bf16.msra.mxu0 0
        %871 = vmatprep.subr.bf16.mxu0 0
        %872 = vmatpush1.bf16.msra.mxu0 0
        %873 = vmatprep.subr.bf16.mxu0 0
        %874 = vmatpush1.bf16.msra.mxu0 0
        %875 = vmatprep.subr.bf16.mxu0 0
        %876 = vmatpush1.bf16.msra.mxu0 0
        %877 = vmatprep.subr.bf16.mxu0 0
        %878 = vmatpush1.bf16.msra.mxu0 0
        %879 = vmatprep.subr.bf16.mxu0 0
        %880 = vmatpush1.bf16.msra.mxu0 0
        %881 = vmatprep.subr.bf16.mxu0 0
        %882 = vmatpush1.bf16.msra.mxu0 0
        %883 = vmatprep.subr.bf16.mxu0 0
        %884 = vmatpush1.bf16.msra.mxu0 0
        %885 = vmatprep.subr.bf16.mxu0 0
        %886 = vmatpush1.bf16.msra.mxu0 0
        %887 = vmatprep.subr.bf16.mxu0 0
        %888 = vmatpush1.bf16.msra.mxu0 0
        %889 = vmatprep.subr.bf16.mxu0 0
        %890 = vmatpush1.bf16.msra.mxu0 0
        %891 = vmatprep.subr.bf16.mxu0 0
        %892 = vmatpush1.bf16.msra.mxu0 0
        %893 = vmatprep.subr.bf16.mxu0 0
        %894 = vmatpush1.bf16.msra.mxu0 0
        %895 = vmatprep.mubr.bf16.mxu0 0
        %896 = vmatmul.mubr.bf16.gmra.mrb[0].mxu0 %v861
        %v897 = vpop.f32.mrb[0].mxu0
        %v898 = vadd.f32 %v847, %v897
        %v899 = vpop.f32.mrb[0].mxu0
        %v900 = vpop.f32.mrb[0].mxu0
        %v901 = vpop.f32.mrb[0].mxu0
        %902 = vdwg.mxu0
        %903 = vst.msk [vmem:[%s269] sm:$0xff] %vm276, %v898
        %s904 = sand.u32 %s181, 1
        %s905 = scalar_lea.sflag [#allocation3], %s904
        %s906 = sand.u32 %s181, 1
        %s907 = smul.addr %s906, 8
        %s908 = scalar_lea.vmem [#allocation2], %s907
        // Predicated region
        $region49: #{attention_subblock.1} parent=47 // pred_check
          %p909 = pneg %p191
        $region50: #{attention_subblock.1} parent=47 // pred_check_branch
          %911 = sbr.rel (%p909) target = $region52
        $region51: #{attention_subblock.1} parent=47 // pred_region
          %s913 = ssub.s32 128, 128
          %914 = vsyncadd %s905, %s913
          %s915 = smul.addr %s21, 128
          %s916 = scalar_lea.hbm %s7, %s915
          %s918 = sshll.u32 %s908, 4
          %s919 = int_to_ptr.vmem [resolvable:$true] %s918
          %921 = dma.vmem_to_hbm [thread:$0]  %s919, 128, %s916, %s905
        $region52: #{attention_subblock.1} parent=47 // pred_fallthru
          _
      $region48: #{attention_subblock.1} parent=5 // pred_fallthru
        _
      %p922 = scmp.le.s32.totalorder 2, %s16
      // Predicated region
      $region53: #{attention_subblock.1} parent=5 // pred_check
        %p923 = pneg %p922
      $region54: #{attention_subblock.1} parent=5 // pred_check_branch
        %925 = sbr.rel (%p923) target = $region56
      $region55: #{attention_subblock.1} parent=5 // pred_region
        %s926 = ssub.s32 %s16, 2
        // Predicated region
        $region57: #{attention_subblock.1} parent=55 // pred_check
          %p927 = pneg %p197
        $region58: #{attention_subblock.1} parent=55 // pred_check_branch
          %929 = sbr.rel (%p927) target = $region60
        $region59: #{attention_subblock.1} parent=55 // pred_region
          %s930 = sand.u32 %s182, 1
          %s931 = scalar_lea.sflag [#allocation3], %s930
          %s932 = sand.u32 %s182, 1
          %s933 = smul.addr %s932, 8
          %s934 = scalar_lea.vmem [#allocation2], %s933
          %935 = dma.done %s931, 128
        $region60: #{attention_subblock.1} parent=55 // pred_fallthru
          _
      $region56: #{attention_subblock.1} parent=5 // pred_fallthru
        _
    $region6: #{attention_subblock.1} parent=1 // loop_footer
      %s20 = sadd.s32 1, %s16
    $region7: #{attention_subblock.1} parent=1 // loop_footer_branch
      %15 = sbr.rel target = $region3
    $region8: #{attention_subblock.1} parent=1 // loop_exit
      _
    %936 = vsyncpa [#allocation3], 1
    %s937 = scalar_lea.sflag [#allocation3], 1
    %938 = vsyncpa %s937, 1

</llo_original>
